<compile_context>
chip_gen: v7x
topology: tpu7x:2x2x1
jax: 0.10.0
libtpu: 0.0.40
codegen_flags: <defaults>
</compile_context>

<pallas_src>
import jax
import jax.numpy as jnp
from jax.experimental import pallas as pl
from jax.experimental.pallas import tpu as pltpu


def _round_up(x, m):
    return ((x + m - 1) // m) * m


def mlp_kernel(x_ref, w1_ref, b1_ref, w2_ref, b2_ref, o_ref, acc_ref):
    # x_ref : (tm, E_pad)        token tile
    # w1_ref: (E_pad, tn)        c_fc weight slab (in, out layout)
    # b1_ref: (1, tn)            c_fc bias slice for this hidden tile
    # w2_ref: (tn, E_pad)        c_proj weight slab
    # b2_ref: (1, E_pad)         c_proj bias
    # o_ref : (tm, E_pad)        output tile
    # acc_ref: (tm, E_pad) f32   c_proj accumulator (resident across j)
    j = pl.program_id(1)

    @pl.when(j == 0)
    def _init():
        acc_ref[...] = jnp.zeros_like(acc_ref)

    # c_fc slice: native dtypes into the MXU, f32 accumulator.
    h = jnp.dot(x_ref[...], w1_ref[...], preferred_element_type=jnp.float32)
    h = h + b1_ref[...].astype(jnp.float32)

    # SiLU in f32 (sigmoid runs on the EUP slot, essentially free under MXU work).
    h = h * jax.nn.sigmoid(h)

    # Partial c_proj: accumulate this hidden slice's contribution.
    acc_ref[...] += jnp.dot(h.astype(w2_ref.dtype), w2_ref[...],
                            preferred_element_type=jnp.float32)

    @pl.when(j == pl.num_programs(1) - 1)
    def _finalize():
        y = acc_ref[...] + b2_ref[...].astype(jnp.float32)
        # d1 (dropout) in eval mode is identity.
        o_ref[...] = y.astype(o_ref.dtype)


def _vmem_capacity_bytes():
    try:
        return int(pltpu.get_tpu_info().vmem_capacity_bytes)
    except Exception:
        return 64 * 1024 * 1024  # conservative default (v7x per-TC VMEM)


def _choose_tiles(M, E_pad, H, itemsize, vmem_bytes):
    """Pick (tm, tn) so double-buffered tiles + f32 accumulator fit VMEM."""
    budget = int(vmem_bytes * 0.6)

    def fits(tm, tn):
        acc = tm * E_pad * 4
        per_step = (tm * E_pad       # x tile
                    + E_pad * tn     # W1 slab
                    + tn             # b1 slice
                    + tn * E_pad     # W2 slab
                    + E_pad          # b2
                    + tm * E_pad     # out tile
                    ) * itemsize
        return 2 * per_step + acc <= budget

    # Token tile: MXU-matched 256 rows when there is enough work; otherwise
    # just cover M (rounded up to the 8-sublane granule).
    tm = 256 if M >= 256 else _round_up(M, 8)
    # Hidden tile: largest multiple of 128 lanes (capped at 2048) that fits.
    tn = min(_round_up(H, 128), 2048)
    while tn > 128 and not fits(tm, tn):
        tn -= 128
    while tm > 8 and not fits(tm, tn):
        tm -= 8
    return tm, tn


@jax.jit
def mlp_forward(x, w1, b1, w2, b2):
    """x: (B, T, n_embd). Weights given as (in, out) matrices, biases (1, out)."""
    B, T, E = x.shape
    H = w1.shape[1]
    M = B * T

    vmem_cap = _vmem_capacity_bytes()
    itemsize = jnp.dtype(x.dtype).itemsize

    E_pad = _round_up(E, 128)                 # lane-dense output / feature dim
    tm, tn = _choose_tiles(M, E_pad, H, itemsize, vmem_cap)
    M_pad = _round_up(M, tm)
    H_pad = _round_up(H, tn)

    # Zero padding is exact: padded hidden units have zero rows into c_proj,
    # padded feature columns have zero weights/bias out of c_proj.
    x_p = jnp.pad(x.reshape(M, E), ((0, M_pad - M), (0, E_pad - E)))
    w1_p = jnp.pad(w1, ((0, E_pad - E), (0, H_pad - H)))
    b1_p = jnp.pad(b1, ((0, 0), (0, H_pad - H)))
    w2_p = jnp.pad(w2, ((0, H_pad - H), (0, E_pad - E)))
    b2_p = jnp.pad(b2, ((0, 0), (0, E_pad - E)))

    grid = (M_pad // tm, H_pad // tn)         # hidden (reduction) axis last

    cost = pl.CostEstimate(
        flops=4 * M_pad * E_pad * H_pad,                     # two matmuls
        transcendentals=M_pad * H_pad,                       # sigmoid
        bytes_accessed=itemsize * (2 * M_pad * E_pad         # x + out
                                   + 2 * E_pad * H_pad       # W1 + W2
                                   + H_pad + E_pad),         # biases
    )

    out_p = pl.pallas_call(
        mlp_kernel,
        out_shape=jax.ShapeDtypeStruct((M_pad, E_pad), x.dtype),
        grid_spec=pltpu.PrefetchScalarGridSpec(
            num_scalar_prefetch=0,
            grid=grid,
            in_specs=[
                pl.BlockSpec((tm, E_pad), lambda i, j: (i, 0)),    # x tile
                pl.BlockSpec((E_pad, tn), lambda i, j: (0, j)),    # W1 slab
                pl.BlockSpec((1, tn), lambda i, j: (0, j)),        # b1 slice
                pl.BlockSpec((tn, E_pad), lambda i, j: (j, 0)),    # W2 slab
                pl.BlockSpec((1, E_pad), lambda i, j: (0, 0)),     # b2
            ],
            out_specs=pl.BlockSpec((tm, E_pad), lambda i, j: (i, 0)),
            scratch_shapes=[pltpu.VMEM((tm, E_pad), jnp.float32)],
        ),
        compiler_params=pltpu.CompilerParams(
            dimension_semantics=("parallel", "arbitrary"),
            vmem_limit_bytes=min(int(vmem_cap * 0.85), 100 * 1024 * 1024),
        ),
        cost_estimate=cost,
    )(x_p, w1_p, b1_p, w2_p, b2_p)

    return out_p[:M, :E].reshape(B, T, E)


def init_mlp_params(key, n_embd, dtype=jnp.float32):
    """Deterministic init matching nn.Linear default (uniform +/- 1/sqrt(fan_in))."""
    hidden = 4 * n_embd
    k1, k2, k3, k4 = jax.random.split(key, 4)

    bound1 = 1.0 / jnp.sqrt(n_embd)
    # PyTorch Linear weight is (out, in); store transposed as (in, out) for kernel.
    w1 = jax.random.uniform(k1, (n_embd, hidden), dtype, -bound1, bound1)
    b1 = jax.random.uniform(k2, (1, hidden), dtype, -bound1, bound1)

    bound2 = 1.0 / jnp.sqrt(hidden)
    w2 = jax.random.uniform(k3, (hidden, n_embd), dtype, -bound2, bound2)
    b2 = jax.random.uniform(k4, (1, n_embd), dtype, -bound2, bound2)
    return w1, b1, w2, b2


def mlp_reference(x, w1, b1, w2, b2):
    h = jnp.dot(x, w1) + b1
    h = h * jax.nn.sigmoid(h)
    return jnp.dot(h, w2) + b2


if __name__ == "__main__":
    key = jax.random.PRNGKey(0)
    kx, kp = jax.random.split(key)

    B, T, n_embd = 2, 8, 32          # hidden = 128
    dropout = 0.1                    # unused at inference (identity)

    x = jax.random.normal(kx, (B, T, n_embd), dtype=jnp.float32)
    w1, b1, w2, b2 = init_mlp_params(kp, n_embd)

    out = jax.block_until_ready(mlp_forward(x, w1, b1, w2, b2))
    ref = mlp_reference(x, w1, b1, w2, b2)

    assert out.shape == (B, T, n_embd)
    assert jnp.allclose(out, ref, atol=1e-4, rtol=1e-4), "mismatch vs reference"

    print("KERNEL_OK")
</pallas_src>

<mosaic_0001>
module attributes {stable_mosaic.version = 11 : i64} {
  func.func @mlp_kernel(%arg0: i32, %arg1: i32, %arg2: memref<16x128xf32, #tpu.memory_space<vmem>>, %arg3: memref<128x128xf32, #tpu.memory_space<vmem>>, %arg4: memref<1x128xf32, #tpu.memory_space<vmem>>, %arg5: memref<128x128xf32, #tpu.memory_space<vmem>>, %arg6: memref<1x128xf32, #tpu.memory_space<vmem>>, %arg7: memref<16x128xf32, #tpu.memory_space<vmem>>, %arg8: memref<16x128xf32, #tpu.memory_space<vmem>>) attributes {dimension_semantics = [#tpu.dimension_semantics<parallel>, #tpu.dimension_semantics<arbitrary>], iteration_bounds = array<i64: 1, 1>, scalar_prefetch = 0 : i64, scratch_operands = 1 : i64, tpu.core_type = #tpu.core_type<tc>, window_params = [{transform_indices = @transform_0, window_bounds = array<i64: 16, 128>}, {transform_indices = @transform_1, window_bounds = array<i64: 128, 128>}, {transform_indices = @transform_2, window_bounds = array<i64: 1, 128>}, {transform_indices = @transform_3, window_bounds = array<i64: 128, 128>}, {pipeline_mode = #tpu.pipeline_mode<synchronous>, transform_indices = @transform_4, window_bounds = array<i64: 1, 128>}, {transform_indices = @transform_5, window_bounds = array<i64: 16, 128>}]} {
    %c0_i32 = arith.constant 0 : i32
    %0 = arith.cmpi eq, %arg1, %c0_i32 : i32
    %1 = arith.extui %0 : i1 to i32
    %c0_i32_0 = arith.constant 0 : i32
    %2 = arith.cmpi ne, %1, %c0_i32_0 : i32
    scf.if %2 {
      %cst_16 = arith.constant 0.000000e+00 : f32
      %23 = vector.broadcast %cst_16 : f32 to vector<16x128xf32>
      %c0_17 = arith.constant 0 : index
      %c0_18 = arith.constant 0 : index
      %24 = vector.load %arg8[%c0_17, %c0_18] : memref<16x128xf32, #tpu.memory_space<vmem>>, vector<16x128xf32>
      tpu.vector_store %arg8[%c0_17, %c0_18], %23 {strides = array<i32>} : memref<16x128xf32, #tpu.memory_space<vmem>>, vector<16x128xf32>,
    } else {
    }
    %c0 = arith.constant 0 : index
    %c0_1 = arith.constant 0 : index
    %3 = vector.load %arg2[%c0, %c0_1] : memref<16x128xf32, #tpu.memory_space<vmem>>, vector<16x128xf32>
    %c0_2 = arith.constant 0 : index
    %c0_3 = arith.constant 0 : index
    %4 = vector.load %arg3[%c0_2, %c0_3] : memref<128x128xf32, #tpu.memory_space<vmem>>, vector<128x128xf32>
    %cst = arith.constant dense<0.000000e+00> : vector<16x128xf32>
    %5 = tpu.matmul %3, %4, %cst {dimension_numbers = #tpu.dot_dimension_numbers<[1], [0], [0], [1], [0, 0, 1, 1], [], []>} : vector<16x128xf32>, vector<128x128xf32>, vector<16x128xf32> -> vector<16x128xf32>
    %c0_4 = arith.constant 0 : index
    %c0_5 = arith.constant 0 : index
    %6 = vector.load %arg4[%c0_4, %c0_5] : memref<1x128xf32, #tpu.memory_space<vmem>>, vector<1x128xf32>
    %7 = vector.broadcast %6 : vector<1x128xf32> to vector<16x128xf32>
    %8 = arith.addf %5, %7 : vector<16x128xf32>
    %9 = arith.negf %8 : vector<16x128xf32>
    %10 = math.exp %9 : vector<16x128xf32>
    %cst_6 = arith.constant 1.000000e+00 : f32
    %11 = vector.broadcast %cst_6 : f32 to vector<16x128xf32>
    %12 = arith.addf %11, %10 : vector<16x128xf32>
    %13 = arith.divf %11, %12 : vector<16x128xf32>
    %14 = arith.mulf %8, %13 : vector<16x128xf32>
    %c0_7 = arith.constant 0 : index
    %c0_8 = arith.constant 0 : index
    %15 = vector.load %arg8[%c0_7, %c0_8] : memref<16x128xf32, #tpu.memory_space<vmem>>, vector<16x128xf32>
    %c0_9 = arith.constant 0 : index
    %c0_10 = arith.constant 0 : index
    %16 = vector.load %arg5[%c0_9, %c0_10] : memref<128x128xf32, #tpu.memory_space<vmem>>, vector<128x128xf32>
    %cst_11 = arith.constant dense<0.000000e+00> : vector<16x128xf32>
    %17 = tpu.matmul %14, %16, %cst_11 {dimension_numbers = #tpu.dot_dimension_numbers<[1], [0], [0], [1], [0, 0, 1, 1], [], []>} : vector<16x128xf32>, vector<128x128xf32>, vector<16x128xf32> -> vector<16x128xf32>
    %18 = arith.addf %15, %17 : vector<16x128xf32>
    %c0_12 = arith.constant 0 : index
    %c0_13 = arith.constant 0 : index
    %19 = vector.load %arg8[%c0_12, %c0_13] : memref<16x128xf32, #tpu.memory_space<vmem>>, vector<16x128xf32>
    tpu.vector_store %arg8[%c0_12, %c0_13], %18 {strides = array<i32>} : memref<16x128xf32, #tpu.memory_space<vmem>>, vector<16x128xf32>,
    %c0_i32_14 = arith.constant 0 : i32
    %20 = arith.cmpi eq, %arg1, %c0_i32_14 : i32
    %21 = arith.extui %20 : i1 to i32
    %c0_i32_15 = arith.constant 0 : i32
    %22 = arith.cmpi ne, %21, %c0_i32_15 : i32
    scf.if %22 {
      %c0_16 = arith.constant 0 : index
      %c0_17 = arith.constant 0 : index
      %23 = vector.load %arg8[%c0_16, %c0_17] : memref<16x128xf32, #tpu.memory_space<vmem>>, vector<16x128xf32>
      %c0_18 = arith.constant 0 : index
      %c0_19 = arith.constant 0 : index
      %24 = vector.load %arg6[%c0_18, %c0_19] : memref<1x128xf32, #tpu.memory_space<vmem>>, vector<1x128xf32>
      %25 = vector.broadcast %24 : vector<1x128xf32> to vector<16x128xf32>
      %26 = arith.addf %23, %25 : vector<16x128xf32>
      %c0_20 = arith.constant 0 : index
      %c0_21 = arith.constant 0 : index
      %27 = vector.load %arg7[%c0_20, %c0_21] : memref<16x128xf32, #tpu.memory_space<vmem>>, vector<16x128xf32>
      tpu.vector_store %arg7[%c0_20, %c0_21], %26 {strides = array<i32>} : memref<16x128xf32, #tpu.memory_space<vmem>>, vector<16x128xf32>,
    } else {
    }
    return
  }
  func.func @transform_0(%arg0: i32, %arg1: i32) -> (i32, i32) {
    %c0_i32 = arith.constant 0 : i32
    %c0_i32_0 = arith.constant 0 : i32
    return %arg0, %c0_i32 : i32, i32
  }
  func.func @transform_1(%arg0: i32, %arg1: i32) -> (i32, i32) {
    %c0_i32 = arith.constant 0 : i32
    %c0_i32_0 = arith.constant 0 : i32
    return %c0_i32, %arg1 : i32, i32
  }
  func.func @transform_2(%arg0: i32, %arg1: i32) -> (i32, i32) {
    %c0_i32 = arith.constant 0 : i32
    %c0_i32_0 = arith.constant 0 : i32
    return %c0_i32, %arg1 : i32, i32
  }
  func.func @transform_3(%arg0: i32, %arg1: i32) -> (i32, i32) {
    %c0_i32 = arith.constant 0 : i32
    %c0_i32_0 = arith.constant 0 : i32
    return %arg1, %c0_i32 : i32, i32
  }
  func.func @transform_4(%arg0: i32, %arg1: i32) -> (i32, i32) {
    %c0_i32 = arith.constant 0 : i32
    %c0_i32_0 = arith.constant 0 : i32
    %c0_i32_1 = arith.constant 0 : i32
    return %c0_i32, %c0_i32_0 : i32, i32
  }
  func.func @transform_5(%arg0: i32, %arg1: i32) -> (i32, i32) {
    %c0_i32 = arith.constant 0 : i32
    %c0_i32_0 = arith.constant 0 : i32
    return %arg0, %c0_i32 : i32, i32
  }
}

</mosaic_0001>

<llo_original>
// kernel: mlp_forward.1
$region0: #{mlp_forward.1}
  #allocation0 [shape = 'u32[]', space=smem, size = 0x4, offset = 0x4, fixed_abs, tag = 'smem constant byte address 0x4 - core index']
  #allocation1 [shape = 'u32[144,128]{1,0:T(1,128)}', space=vmem, size = 0x12000, scoped, tag = 'internal scratch']
  #allocation2 [shape = 'f32[16,128]{1,0:T(8,128)}', space=vmem, size = 0x2000, scoped, tag = 'scratch operand']
  %s0 = inlined_call_operand.vmem [shape: f32[16,128], index: 0, kind: input, shape index: {}]
  %s1 = inlined_call_operand.vmem [shape: f32[128,128], index: 1, kind: input, shape index: {}]
  %s2 = inlined_call_operand.vmem [shape: f32[1,128], index: 2, kind: input, shape index: {}]
  %s3 = inlined_call_operand.vmem [shape: f32[128,128], index: 3, kind: input, shape index: {}]
  %s4 = inlined_call_operand.vmem [shape: f32[1,128], index: 4, kind: input, shape index: {}]
  %s5 = inlined_call_operand.vmem [shape: f32[16,128], index: 5, kind: output, shape index: {}]
  %s6 = sld [smem:[#allocation0]]
  $region38: #{mlp_forward.1} parent=0
    _
  %s8 = ssub.s32 1, %s6
  %s9 = scalar_select 0, %s8, %s6
  // Predicated region
  $region2: #{mlp_forward.1} parent=0 // pred_check
    _
  $region3: #{mlp_forward.1} parent=0 // pred_check_branch
    %11 = sbr.rel (0) target = $region5
  $region4: #{mlp_forward.1} parent=0 // pred_region
    _
  $region5: #{mlp_forward.1} parent=0 // pred_fallthru
    _
  // Predicated region
  $region6: #{mlp_forward.1} parent=0 // pred_check
    _
  $region7: #{mlp_forward.1} parent=0 // pred_check_branch
    %13 = sbr.rel (0) target = $region9
  $region8: #{mlp_forward.1} parent=0 // pred_region
    _
  $region9: #{mlp_forward.1} parent=0 // pred_fallthru
    _
  // Predicated region
  $region10: #{mlp_forward.1} parent=0 // pred_check
    _
  $region11: #{mlp_forward.1} parent=0 // pred_check_branch
    %15 = sbr.rel (0) target = $region13
  $region12: #{mlp_forward.1} parent=0 // pred_region
    _
  $region13: #{mlp_forward.1} parent=0 // pred_fallthru
    _
  // Predicated region
  $region14: #{mlp_forward.1} parent=0 // pred_check
    _
  $region15: #{mlp_forward.1} parent=0 // pred_check_branch
    %17 = sbr.rel (0) target = $region17
  $region16: #{mlp_forward.1} parent=0 // pred_region
    _
  $region17: #{mlp_forward.1} parent=0 // pred_fallthru
    _
  // Predicated region
  $region18: #{mlp_forward.1} parent=0 // pred_check
    _
  $region19: #{mlp_forward.1} parent=0 // pred_check_branch
    %19 = sbr.rel (0) target = $region21
  $region20: #{mlp_forward.1} parent=0 // pred_region
    _
  $region21: #{mlp_forward.1} parent=0 // pred_fallthru
    _
  %p20 = scmp.eq.s32.totalorder 0, 0
  // Predicated region
  $region22: #{mlp_forward.1} parent=0 // pred_check
    %p21 = pneg %p20
  $region23: #{mlp_forward.1} parent=0 // pred_check_branch
    %23 = sbr.rel (%p21) target = $region25
  $region24: #{mlp_forward.1} parent=0 // pred_region
    %24 = vst [vmem:[#allocation2] sm:$0xff] 0.0
    %25 = vst [vmem:[#allocation2 + $0x8] sm:$0xff] 0.0
  $region25: #{mlp_forward.1} parent=0 // pred_fallthru
    _
  %v26 = vld [vmem:[%s0] sm:$0xff]
  %v27 = vld [vmem:[%s0 + $0x8] sm:$0xff]
  %v28 = vld [vmem:[%s1] sm:$0xff]
  %v29 = vld [vmem:[%s1 + $0x8] sm:$0xff]
  %v30 = vld [vmem:[%s1 + $0x10] sm:$0xff]
  %v31 = vld [vmem:[%s1 + $0x18] sm:$0xff]
  %v32 = vld [vmem:[%s1 + $0x20] sm:$0xff]
  %v33 = vld [vmem:[%s1 + $0x28] sm:$0xff]
  %v34 = vld [vmem:[%s1 + $0x30] sm:$0xff]
  %v35 = vld [vmem:[%s1 + $0x38] sm:$0xff]
  %v36 = vld [vmem:[%s1 + $0x40] sm:$0xff]
  %v37 = vld [vmem:[%s1 + $0x48] sm:$0xff]
  %v38 = vld [vmem:[%s1 + $0x50] sm:$0xff]
  %v39 = vld [vmem:[%s1 + $0x58] sm:$0xff]
  %v40 = vld [vmem:[%s1 + $0x60] sm:$0xff]
  %v41 = vld [vmem:[%s1 + $0x68] sm:$0xff]
  %v42 = vld [vmem:[%s1 + $0x70] sm:$0xff]
  %v43 = vld [vmem:[%s1 + $0x78] sm:$0xff]
  %v44 = vld [vmem:[%s2] sm:$0x1]
  %v46 = vlaneseq
  %v47 = vshrl.u32 %v46, 7
  %v48 = vsub.s32 0, %v47
  %v49 = vrot.slane %v44, %v48
  %51 = vmatprep.subr.mxu0 0.0
  %52 = vmatpush1.msra.mxu0 %v28
  %53 = vmatprep.subr.mxu0 0.0
  %54 = vmatpush1.msra.mxu0 %v29
  %55 = vmatprep.subr.mxu0 0.0
  %56 = vmatpush1.msra.mxu0 %v30
  %57 = vmatprep.subr.mxu0 0.0
  %58 = vmatpush1.msra.mxu0 %v31
  %59 = vmatprep.subr.mxu0 0.0
  %60 = vmatpush1.msra.mxu0 %v32
  %61 = vmatprep.subr.mxu0 0.0
  %62 = vmatpush1.msra.mxu0 %v33
  %63 = vmatprep.subr.mxu0 0.0
  %64 = vmatpush1.msra.mxu0 %v34
  %65 = vmatprep.subr.mxu0 0.0
  %66 = vmatpush1.msra.mxu0 %v35
  %67 = vmatprep.subr.mxu0 0.0
  %68 = vmatpush1.msra.mxu0 %v36
  %69 = vmatprep.subr.mxu0 0.0
  %70 = vmatpush1.msra.mxu0 %v37
  %71 = vmatprep.subr.mxu0 0.0
  %72 = vmatpush1.msra.mxu0 %v38
  %73 = vmatprep.subr.mxu0 0.0
  %74 = vmatpush1.msra.mxu0 %v39
  %75 = vmatprep.subr.mxu0 0.0
  %76 = vmatpush1.msra.mxu0 %v40
  %77 = vmatprep.subr.mxu0 0.0
  %78 = vmatpush1.msra.mxu0 %v41
  %79 = vmatprep.subr.mxu0 0.0
  %80 = vmatpush1.msra.mxu0 %v42
  %81 = vmatprep.subr.mxu0 0.0
  %82 = vmatpush1.msra.mxu0 %v43
  %83 = vmatprep.subr.mxu0 0.0
  %84 = vmatpush1.msra.mxu0 0.0
  %85 = vmatprep.subr.mxu0 0.0
  %86 = vmatpush1.msra.mxu0 0.0
  %87 = vmatprep.subr.mxu0 0.0
  %88 = vmatpush1.msra.mxu0 0.0
  %89 = vmatprep.subr.mxu0 0.0
  %90 = vmatpush1.msra.mxu0 0.0
  %91 = vmatprep.subr.mxu0 0.0
  %92 = vmatpush1.msra.mxu0 0.0
  %93 = vmatprep.subr.mxu0 0.0
  %94 = vmatpush1.msra.mxu0 0.0
  %95 = vmatprep.subr.mxu0 0.0
  %96 = vmatpush1.msra.mxu0 0.0
  %97 = vmatprep.subr.mxu0 0.0
  %98 = vmatpush1.msra.mxu0 0.0
  %99 = vmatprep.subr.mxu0 0.0
  %100 = vmatpush1.msra.mxu0 0.0
  %101 = vmatprep.subr.mxu0 0.0
  %102 = vmatpush1.msra.mxu0 0.0
  %103 = vmatprep.subr.mxu0 0.0
  %104 = vmatpush1.msra.mxu0 0.0
  %105 = vmatprep.subr.mxu0 0.0
  %106 = vmatpush1.msra.mxu0 0.0
  %107 = vmatprep.subr.mxu0 0.0
  %108 = vmatpush1.msra.mxu0 0.0
  %109 = vmatprep.subr.mxu0 0.0
  %110 = vmatpush1.msra.mxu0 0.0
  %111 = vmatprep.subr.mxu0 0.0
  %112 = vmatpush1.msra.mxu0 0.0
  %113 = vmatprep.subr.mxu0 0.0
  %114 = vmatpush1.msra.mxu0 0.0
  %115 = vmatprep.mubr.f32.mxu0 0.0
  %116 = vmatmul.mubr.f32.gmra.mrb[0].mxu0 %v26
  %v117 = vpop.f32.mrb[0].mxu0
  %v118 = vadd.f32 %v49, %v117
  %v119 = vpop.f32.mrb[0].mxu0
  %120 = vmatprep.mubr.f32.mxu0 0.0
  %121 = vmatmul.mubr.f32.gmra.mrb[0].mxu0 %v27
  %v122 = vpop.f32.mrb[0].mxu0
  %v123 = vadd.f32 %v49, %v122
  %v124 = vpop.f32.mrb[0].mxu0
  %125 = vdwg.mxu0
  %v126 = vxor.u32 %v118, 2147483648
  %v127 = vxor.u32 %v123, 2147483648
  %v128 = vmul.f32 %v126, 1.442695
  %v129 = vpow.pop %v128
  %v130 = vmul.f32 %v127, 1.442695
  %v131 = vpow.pop %v130
  %v132 = vadd.f32 %v129, 1.0
  %v133 = vadd.f32 %v131, 1.0
  %v134 = vrcp.pop %v132
  %v135 = vmul.f32 1.0, %v134
  %v136 = vrcp.pop %v133
  %v137 = vmul.f32 1.0, %v136
  %v138 = vmul.f32 %v118, %v135
  %v139 = vmul.f32 %v123, %v137
  %v140 = vld [vmem:[#allocation2] sm:$0xff]
  %v141 = vld [vmem:[#allocation2 + $0x8] sm:$0xff]
  %v142 = vld [vmem:[%s3] sm:$0xff]
  %v143 = vld [vmem:[%s3 + $0x8] sm:$0xff]
  %v144 = vld [vmem:[%s3 + $0x10] sm:$0xff]
  %v145 = vld [vmem:[%s3 + $0x18] sm:$0xff]
  %v146 = vld [vmem:[%s3 + $0x20] sm:$0xff]
  %v147 = vld [vmem:[%s3 + $0x28] sm:$0xff]
  %v148 = vld [vmem:[%s3 + $0x30] sm:$0xff]
  %v149 = vld [vmem:[%s3 + $0x38] sm:$0xff]
  %v150 = vld [vmem:[%s3 + $0x40] sm:$0xff]
  %v151 = vld [vmem:[%s3 + $0x48] sm:$0xff]
  %v152 = vld [vmem:[%s3 + $0x50] sm:$0xff]
  %v153 = vld [vmem:[%s3 + $0x58] sm:$0xff]
  %v154 = vld [vmem:[%s3 + $0x60] sm:$0xff]
  %v155 = vld [vmem:[%s3 + $0x68] sm:$0xff]
  %v156 = vld [vmem:[%s3 + $0x70] sm:$0xff]
  %v157 = vld [vmem:[%s3 + $0x78] sm:$0xff]
  %158 = vmatprep.subr.mxu0 0.0
  %159 = vmatpush1.msra.mxu0 %v142
  %160 = vmatprep.subr.mxu0 0.0
  %161 = vmatpush1.msra.mxu0 %v143
  %162 = vmatprep.subr.mxu0 0.0
  %163 = vmatpush1.msra.mxu0 %v144
  %164 = vmatprep.subr.mxu0 0.0
  %165 = vmatpush1.msra.mxu0 %v145
  %166 = vmatprep.subr.mxu0 0.0
  %167 = vmatpush1.msra.mxu0 %v146
  %168 = vmatprep.subr.mxu0 0.0
  %169 = vmatpush1.msra.mxu0 %v147
  %170 = vmatprep.subr.mxu0 0.0
  %171 = vmatpush1.msra.mxu0 %v148
  %172 = vmatprep.subr.mxu0 0.0
  %173 = vmatpush1.msra.mxu0 %v149
  %174 = vmatprep.subr.mxu0 0.0
  %175 = vmatpush1.msra.mxu0 %v150
  %176 = vmatprep.subr.mxu0 0.0
  %177 = vmatpush1.msra.mxu0 %v151
  %178 = vmatprep.subr.mxu0 0.0
  %179 = vmatpush1.msra.mxu0 %v152
  %180 = vmatprep.subr.mxu0 0.0
  %181 = vmatpush1.msra.mxu0 %v153
  %182 = vmatprep.subr.mxu0 0.0
  %183 = vmatpush1.msra.mxu0 %v154
  %184 = vmatprep.subr.mxu0 0.0
  %185 = vmatpush1.msra.mxu0 %v155
  %186 = vmatprep.subr.mxu0 0.0
  %187 = vmatpush1.msra.mxu0 %v156
  %188 = vmatprep.subr.mxu0 0.0
  %189 = vmatpush1.msra.mxu0 %v157
  %190 = vmatprep.subr.mxu0 0.0
  %191 = vmatpush1.msra.mxu0 0.0
  %192 = vmatprep.subr.mxu0 0.0
  %193 = vmatpush1.msra.mxu0 0.0
  %194 = vmatprep.subr.mxu0 0.0
  %195 = vmatpush1.msra.mxu0 0.0
  %196 = vmatprep.subr.mxu0 0.0
  %197 = vmatpush1.msra.mxu0 0.0
  %198 = vmatprep.subr.mxu0 0.0
  %199 = vmatpush1.msra.mxu0 0.0
  %200 = vmatprep.subr.mxu0 0.0
  %201 = vmatpush1.msra.mxu0 0.0
  %202 = vmatprep.subr.mxu0 0.0
  %203 = vmatpush1.msra.mxu0 0.0
  %204 = vmatprep.subr.mxu0 0.0
  %205 = vmatpush1.msra.mxu0 0.0
  %206 = vmatprep.subr.mxu0 0.0
  %207 = vmatpush1.msra.mxu0 0.0
  %208 = vmatprep.subr.mxu0 0.0
  %209 = vmatpush1.msra.mxu0 0.0
  %210 = vmatprep.subr.mxu0 0.0
  %211 = vmatpush1.msra.mxu0 0.0
  %212 = vmatprep.subr.mxu0 0.0
  %213 = vmatpush1.msra.mxu0 0.0
  %214 = vmatprep.subr.mxu0 0.0
  %215 = vmatpush1.msra.mxu0 0.0
  %216 = vmatprep.subr.mxu0 0.0
  %217 = vmatpush1.msra.mxu0 0.0
  %218 = vmatprep.subr.mxu0 0.0
  %219 = vmatpush1.msra.mxu0 0.0
  %220 = vmatprep.subr.mxu0 0.0
  %221 = vmatpush1.msra.mxu0 0.0
  %222 = vmatprep.mubr.f32.mxu0 0.0
  %223 = vmatmul.mubr.f32.gmra.mrb[0].mxu0 %v138
  %v224 = vpop.f32.mrb[0].mxu0
  %v225 = vadd.f32 0.0, %v224
  %v226 = vpop.f32.mrb[0].mxu0
  %227 = vmatprep.mubr.f32.mxu0 0.0
  %228 = vmatmul.mubr.f32.gmra.mrb[0].mxu0 %v139
  %v229 = vpop.f32.mrb[0].mxu0
  %v230 = vadd.f32 0.0, %v229
  %v231 = vpop.f32.mrb[0].mxu0
  %232 = vdwg.mxu0
  %v233 = vadd.f32 %v140, %v225
  %v234 = vadd.f32 %v141, %v230
  %235 = vst [vmem:[#allocation2] sm:$0xff] %v233
  %236 = vst [vmem:[#allocation2 + $0x8] sm:$0xff] %v234
  // Predicated region
  $region26: #{mlp_forward.1} parent=0 // pred_check
    %p237 = pneg %p20
  $region27: #{mlp_forward.1} parent=0 // pred_check_branch
    %239 = sbr.rel (%p237) target = $region29
  $region28: #{mlp_forward.1} parent=0 // pred_region
    %v240 = vld [vmem:[#allocation2] sm:$0xff]
    %v241 = vld [vmem:[#allocation2 + $0x8] sm:$0xff]
    %v242 = vld [vmem:[%s4] sm:$0x1]
    %v244 = vlaneseq
    %v245 = vshrl.u32 %v244, 7
    %v246 = vsub.s32 0, %v245
    %v247 = vrot.slane %v242, %v246
    %v249 = vadd.f32 %v240, %v247
    %v250 = vadd.f32 %v241, %v247
    %251 = vst [vmem:[%s5] sm:$0xff] %v249
    %252 = vst [vmem:[%s5 + $0x8] sm:$0xff] %v250
  $region29: #{mlp_forward.1} parent=0 // pred_fallthru
    _
  // Predicated region
  $region30: #{mlp_forward.1} parent=0 // pred_check
    _
  $region31: #{mlp_forward.1} parent=0 // pred_check_branch
    %254 = sbr.rel (0) target = $region33
  $region32: #{mlp_forward.1} parent=0 // pred_region
    _
  $region33: #{mlp_forward.1} parent=0 // pred_fallthru
    _
  // Predicated region
  $region34: #{mlp_forward.1} parent=0 // pred_check
    _
  $region35: #{mlp_forward.1} parent=0 // pred_check_branch
    %256 = sbr.rel (0) target = $region37
  $region36: #{mlp_forward.1} parent=0 // pred_region
    _
  $region37: #{mlp_forward.1} parent=0 // pred_fallthru
    _

</llo_original>
